<compile_context>
chip_gen: v6e
topology: v6e:2x2x1
jax: 0.10.0
libtpu: 0.0.40
codegen_flags: <defaults>
</compile_context>

<pallas_src>
import jax
import jax.numpy as jnp
from jax.experimental import pallas as pl
from jax.experimental.pallas import tpu as pltpu


def _round_up(x, m):
    return ((x + m - 1) // m) * m


def odefunc_kernel(h_ref, w_rz_ref, w_hh_ref, dh_ref):
    Hp = h_ref.shape[1]                      # padded hidden (multiple of 128)
    h = h_ref[...].astype(jnp.float32)

    # Fused gate matmul: one MXU call yields [r_pre | z_pre], lane-dense 2*Hp.
    rz = jnp.dot(h.astype(w_rz_ref.dtype), w_rz_ref[...],
                 preferred_element_type=jnp.float32)
    r = jax.nn.sigmoid(rz[:, :Hp])
    z = jax.nn.sigmoid(rz[:, Hp:])

    # Candidate state: u = tanh((r * h) @ W_hh^T)
    u = jnp.tanh(
        jnp.dot((r * h).astype(w_hh_ref.dtype), w_hh_ref[...],
                preferred_element_type=jnp.float32))

    # dh = (1 - z) * (u - h)   -- all elementwise math in f32 on the VPU/EUP.
    dh_ref[...] = ((1.0 - z) * (u - h)).astype(dh_ref.dtype)


def prepare_odefunc_weights(w_hr, w_hz, w_hh, *, param_dtype=jnp.float32):
    """One-time weight prep — call this OUTSIDE the ODE solver loop.

    Takes torch-convention (H_out, H_in) weights and returns:
      w_rz   : (Hp, 2*Hp) = [W_hr^T | W_hz^T], zero-padded to Hp = ceil128(H)
      w_hh_t : (Hp, Hp)   = W_hh^T, zero-padded
    """
    H = w_hr.shape[0]
    Hp = _round_up(max(H, 128), 128)

    def pad_t(w):
        wt = w.T.astype(param_dtype)                       # (H_in, H_out)
        return jnp.pad(wt, ((0, Hp - H), (0, Hp - H)))

    w_rz = jnp.concatenate([pad_t(w_hr), pad_t(w_hz)], axis=1)   # (Hp, 2*Hp)
    w_hh_t = pad_t(w_hh)                                         # (Hp, Hp)
    return w_rz, w_hh_t


def odefunc_forward_prepared(h, w_rz, w_hh_t):
    """dh = ODEfunc(h) given weights from `prepare_odefunc_weights`.

    h: (B, H).  Returns (B, H) with the same dtype as h.
    """
    B, H = h.shape
    Hp = w_hh_t.shape[0]

    # Batch tiling: sublane-aligned tile, grid axis marked "parallel".
    B_pad8 = _round_up(B, 8)
    bm = min(B_pad8, 256)
    B_pad = _round_up(B, bm)

    h_p = jnp.pad(h, ((0, B_pad - B), (0, Hp - H)))

    grid = (B_pad // bm,)
    h_spec = pl.BlockSpec((bm, Hp), lambda i: (i, 0))
    w_rz_spec = pl.BlockSpec((Hp, 2 * Hp), lambda i: (0, 0))   # VMEM-resident
    w_hh_spec = pl.BlockSpec((Hp, Hp), lambda i: (0, 0))       # VMEM-resident
    out_spec = pl.BlockSpec((bm, Hp), lambda i: (i, 0))

    # Explicit VMEM budget: double-buffered h/dh tiles + resident weights
    # + activation headroom.  Floor at the default scoped limit, cap for v7x.
    w_itemsize = jnp.dtype(w_rz.dtype).itemsize
    vmem_needed = (
        2 * 2 * bm * Hp * 4
        + 2 * (Hp * 2 * Hp + Hp * Hp) * w_itemsize
        + (4 << 20))
    vmem_limit = int(min(max(vmem_needed, 32 << 20), 64 << 20))

    dh_p = pl.pallas_call(
        odefunc_kernel,
        out_shape=jax.ShapeDtypeStruct((B_pad, Hp), h.dtype),
        grid_spec=pl.GridSpec(
            grid=grid,
            in_specs=[h_spec, w_rz_spec, w_hh_spec],
            out_specs=out_spec,
        ),
        compiler_params=pltpu.CompilerParams(
            dimension_semantics=("parallel",),
            vmem_limit_bytes=vmem_limit,
        ),
    )(h_p, w_rz, w_hh_t)

    return dh_p[:B, :H]


def odefunc_forward(h, w_hr, w_hz, w_hh, *, param_dtype=jnp.float32):
    """Convenience wrapper matching the torch module call (prep + kernel).

    For repeated solver sub-steps, call `prepare_odefunc_weights` once and
    reuse `odefunc_forward_prepared` to avoid per-step weight prep.
    """
    w_rz, w_hh_t = prepare_odefunc_weights(
        w_hr, w_hz, w_hh, param_dtype=param_dtype)
    return odefunc_forward_prepared(h, w_rz, w_hh_t)


def odefunc_reference(h, w_hr, w_hz, w_hh):
    x = jnp.zeros_like(h)
    r = jax.nn.sigmoid(x + h @ w_hr.T)
    z = jax.nn.sigmoid(x + h @ w_hz.T)
    u = jnp.tanh(x + (r * h) @ w_hh.T)
    return (1.0 - z) * (u - h)


if __name__ == "__main__":
    hidden_size = 32
    batch = 8

    key = jax.random.PRNGKey(0)
    k_h, k_hr, k_hz, k_hh = jax.random.split(key, 4)

    # Deterministic parameter init (mimics torch.nn.Linear's 1/sqrt(fan_in)
    # uniform bound; exact distribution is irrelevant for the kernel).
    bound = 1.0 / jnp.sqrt(hidden_size)
    w_hr = jax.random.uniform(k_hr, (hidden_size, hidden_size),
                              jnp.float32, -bound, bound)
    w_hz = jax.random.uniform(k_hz, (hidden_size, hidden_size),
                              jnp.float32, -bound, bound)
    w_hh = jax.random.uniform(k_hh, (hidden_size, hidden_size),
                              jnp.float32, -bound, bound)

    h = jax.random.normal(k_h, (batch, hidden_size), jnp.float32)

    # One-time weight prep (outside the per-step call), then the fused kernel.
    w_rz, w_hh_t = prepare_odefunc_weights(w_hr, w_hz, w_hh)
    dh = odefunc_forward_prepared(h, w_rz, w_hh_t)
    dh = jax.block_until_ready(dh)

    dh_ref = odefunc_reference(h, w_hr, w_hz, w_hh)
    assert dh.shape == (batch, hidden_size)
    assert jnp.allclose(dh, dh_ref, atol=1e-5, rtol=1e-5), (
        "Pallas kernel result mismatch vs reference")

    print("KERNEL_OK")
</pallas_src>

<mosaic_0001>
module attributes {stable_mosaic.version = 11 : i64} {
  func.func @odefunc_kernel(%arg0: i32, %arg1: memref<8x128xf32, #tpu.memory_space<vmem>>, %arg2: memref<128x256xf32, #tpu.memory_space<vmem>>, %arg3: memref<128x128xf32, #tpu.memory_space<vmem>>, %arg4: memref<8x128xf32, #tpu.memory_space<vmem>>) attributes {dimension_semantics = [#tpu.dimension_semantics<parallel>], iteration_bounds = array<i64: 1>, scalar_prefetch = 0 : i64, scratch_operands = 0 : i64, tpu.core_type = #tpu.core_type<tc>, window_params = [{transform_indices = @transform_0, window_bounds = array<i64: 8, 128>}, {pipeline_mode = #tpu.pipeline_mode<synchronous>, transform_indices = @transform_1, window_bounds = array<i64: 128, 256>}, {pipeline_mode = #tpu.pipeline_mode<synchronous>, transform_indices = @transform_2, window_bounds = array<i64: 128, 128>}, {transform_indices = @transform_3, window_bounds = array<i64: 8, 128>}]} {
    %c0 = arith.constant 0 : index
    %c0_0 = arith.constant 0 : index
    %0 = vector.load %arg1[%c0, %c0_0] : memref<8x128xf32, #tpu.memory_space<vmem>>, vector<8x128xf32>
    %c0_1 = arith.constant 0 : index
    %c0_2 = arith.constant 0 : index
    %1 = vector.load %arg2[%c0_1, %c0_2] : memref<128x256xf32, #tpu.memory_space<vmem>>, vector<128x256xf32>
    %cst = arith.constant dense<0.000000e+00> : vector<8x256xf32>
    %2 = tpu.matmul %0, %1, %cst {dimension_numbers = #tpu.dot_dimension_numbers<[1], [0], [0], [1], [0, 0, 1, 1], [], []>} : vector<8x128xf32>, vector<128x256xf32>, vector<8x256xf32> -> vector<8x256xf32>
    %3 = vector.extract_strided_slice %2 {offsets = [0, 0], sizes = [8, 128], strides = [1, 1]} : vector<8x256xf32> to vector<8x128xf32>
    %4 = arith.negf %3 : vector<8x128xf32>
    %5 = math.exp %4 : vector<8x128xf32>
    %cst_3 = arith.constant 1.000000e+00 : f32
    %6 = vector.broadcast %cst_3 : f32 to vector<8x128xf32>
    %7 = arith.addf %6, %5 : vector<8x128xf32>
    %8 = arith.divf %6, %7 : vector<8x128xf32>
    %9 = vector.extract_strided_slice %2 {offsets = [0, 128], sizes = [8, 128], strides = [1, 1]} : vector<8x256xf32> to vector<8x128xf32>
    %10 = arith.negf %9 : vector<8x128xf32>
    %11 = math.exp %10 : vector<8x128xf32>
    %cst_4 = arith.constant 1.000000e+00 : f32
    %12 = vector.broadcast %cst_4 : f32 to vector<8x128xf32>
    %13 = arith.addf %12, %11 : vector<8x128xf32>
    %14 = arith.divf %12, %13 : vector<8x128xf32>
    %15 = arith.mulf %8, %0 : vector<8x128xf32>
    %c0_5 = arith.constant 0 : index
    %c0_6 = arith.constant 0 : index
    %16 = vector.load %arg3[%c0_5, %c0_6] : memref<128x128xf32, #tpu.memory_space<vmem>>, vector<128x128xf32>
    %cst_7 = arith.constant dense<0.000000e+00> : vector<8x128xf32>
    %17 = tpu.matmul %15, %16, %cst_7 {dimension_numbers = #tpu.dot_dimension_numbers<[1], [0], [0], [1], [0, 0, 1, 1], [], []>} : vector<8x128xf32>, vector<128x128xf32>, vector<8x128xf32> -> vector<8x128xf32>
    %18 = math.tanh %17 : vector<8x128xf32>
    %cst_8 = arith.constant 1.000000e+00 : f32
    %19 = vector.broadcast %cst_8 : f32 to vector<8x128xf32>
    %20 = arith.subf %19, %14 : vector<8x128xf32>
    %21 = arith.subf %18, %0 : vector<8x128xf32>
    %22 = arith.mulf %20, %21 : vector<8x128xf32>
    %c0_9 = arith.constant 0 : index
    %c0_10 = arith.constant 0 : index
    %23 = vector.load %arg4[%c0_9, %c0_10] : memref<8x128xf32, #tpu.memory_space<vmem>>, vector<8x128xf32>
    tpu.vector_store %arg4[%c0_9, %c0_10], %22 {strides = array<i32>} : memref<8x128xf32, #tpu.memory_space<vmem>>, vector<8x128xf32>,
    return
  }
  func.func @transform_0(%arg0: i32) -> (i32, i32) {
    %c0_i32 = arith.constant 0 : i32
    %c0_i32_0 = arith.constant 0 : i32
    return %arg0, %c0_i32 : i32, i32
  }
  func.func @transform_1(%arg0: i32) -> (i32, i32) {
    %c0_i32 = arith.constant 0 : i32
    %c0_i32_0 = arith.constant 0 : i32
    %c0_i32_1 = arith.constant 0 : i32
    return %c0_i32, %c0_i32_0 : i32, i32
  }
  func.func @transform_2(%arg0: i32) -> (i32, i32) {
    %c0_i32 = arith.constant 0 : i32
    %c0_i32_0 = arith.constant 0 : i32
    %c0_i32_1 = arith.constant 0 : i32
    return %c0_i32, %c0_i32_0 : i32, i32
  }
  func.func @transform_3(%arg0: i32) -> (i32, i32) {
    %c0_i32 = arith.constant 0 : i32
    %c0_i32_0 = arith.constant 0 : i32
    return %arg0, %c0_i32 : i32, i32
  }
}

</mosaic_0001>

<llo_original>
// kernel: tpu_custom_call.1
$region0: #{tpu_custom_call.1}
  #allocation0 [shape = 'u32[]', space=smem, size = 0x4, offset = 0x4, fixed_abs, tag = 'smem constant byte address 0x4 - core index']
  #allocation1 [shape = 'u32[144,128]{1,0:T(1,128)}', space=vmem, size = 0x12000, scoped, tag = 'internal scratch']
  %s0 = inlined_call_operand.hbm [shape: f32[8,128], index: 0, kind: input, shape index: {}]
  %s1 = inlined_call_operand.hbm [shape: f32[128,256], index: 1, kind: input, shape index: {}]
  %s2 = inlined_call_operand.hbm [shape: f32[128,128], index: 2, kind: input, shape index: {}]
  %s3 = inlined_call_operand.hbm [shape: f32[8,128], index: 3, kind: output, shape index: {}]
  %s4 = sld [smem:[#allocation0]]
  $region34: #{tpu_custom_call.1} parent=0
    _
  %s6 = ssub.s32 1, %s4
  %s7 = scalar_select 0, %s6, %s4
  $region1: #{tpu_custom_call.1} parent=0
    #allocation2 [shape = 'u8[4096]{0}', space=vmem, size = 0x1000, scoped, tag = 'input window, operand 0, single buffered']
    #allocation3 [shape = 's32[1]{0}', space=sflag, size = 0x4, scoped, tag = 'scoped memory for tpu_custom_call.1']
    #allocation4 [shape = 's32[1]{0}', space=sflag, size = 0x4, scoped, tag = 'scoped memory for tpu_custom_call.1']
    #allocation5 [shape = 'u8[131072]{0}', space=vmem, size = 0x20000, scoped, tag = 'input window, operand 1, single buffered']
    #allocation6 [shape = 's32[1]{0}', space=sflag, size = 0x4, scoped, tag = 'scoped memory for tpu_custom_call.1']
    #allocation7 [shape = 'u8[65536]{0}', space=vmem, size = 0x10000, scoped, tag = 'input window, operand 2, single buffered']
    #allocation8 [shape = 'u8[4096]{0}', space=vmem, size = 0x1000, scoped, tag = 'output window, operand 0, single buffered']
    %8 = vsyncpa [#allocation3], 0
    %9 = vsyncpa [#allocation6], 0
    %10 = vsyncpa [#allocation4], 0
    // Predicated region
    $region2: #{tpu_custom_call.1} parent=1 // pred_check
      _
    $region3: #{tpu_custom_call.1} parent=1 // pred_check_branch
      %12 = sbr.rel (0) target = $region5
    $region4: #{tpu_custom_call.1} parent=1 // pred_region
      %s14 = ssub.s32 128, 128
      %15 = vsyncadd [#allocation3], %s14
      %s17 = sshll.u32 [#allocation2], 4
      %s18 = int_to_ptr.vmem [resolvable:$true] %s17
      %20 = dma.hbm_to_vmem [thread:$0]  %s0, 128, %s18, [#allocation3]
    $region5: #{tpu_custom_call.1} parent=1 // pred_fallthru
      _
    // Predicated region
    $region6: #{tpu_custom_call.1} parent=1 // pred_check
      _
    $region7: #{tpu_custom_call.1} parent=1 // pred_check_branch
      %22 = sbr.rel (0) target = $region9
    $region8: #{tpu_custom_call.1} parent=1 // pred_region
      %s24 = ssub.s32 4096, 4096
      %25 = vsyncadd [#allocation6], %s24
      %s26 = sshll.u32 [#allocation5], 4
      %s27 = int_to_ptr.vmem [resolvable:$true] %s26
      %32 = dma.hbm_to_vmem [thread:$0]  %s1, 4096, %s27, [#allocation6], 256, 256, 16
    $region9: #{tpu_custom_call.1} parent=1 // pred_fallthru
      _
    // Predicated region
    $region10: #{tpu_custom_call.1} parent=1 // pred_check
      _
    $region11: #{tpu_custom_call.1} parent=1 // pred_check_branch
      %34 = sbr.rel (0) target = $region13
    $region12: #{tpu_custom_call.1} parent=1 // pred_region
      %s36 = ssub.s32 2048, 2048
      %37 = vsyncadd [#allocation6], %s36
      %s38 = sshll.u32 [#allocation7], 4
      %s39 = int_to_ptr.vmem [resolvable:$true] %s38
      %44 = dma.hbm_to_vmem [thread:$0]  %s2, 2048, %s39, [#allocation6], 128, 128, 8
    $region13: #{tpu_custom_call.1} parent=1 // pred_fallthru
      _
    // Predicated region
    $region14: #{tpu_custom_call.1} parent=1 // pred_check
      _
    $region15: #{tpu_custom_call.1} parent=1 // pred_check_branch
      %46 = sbr.rel (0) target = $region17
    $region16: #{tpu_custom_call.1} parent=1 // pred_region
      %47 = dma.done [#allocation3], 128
    $region17: #{tpu_custom_call.1} parent=1 // pred_fallthru
      _
    // Predicated region
    $region18: #{tpu_custom_call.1} parent=1 // pred_check
      _
    $region19: #{tpu_custom_call.1} parent=1 // pred_check_branch
      %49 = sbr.rel (0) target = $region21
    $region20: #{tpu_custom_call.1} parent=1 // pred_region
      %50 = dma.done [#allocation6], 4096
    $region21: #{tpu_custom_call.1} parent=1 // pred_fallthru
      _
    // Predicated region
    $region22: #{tpu_custom_call.1} parent=1 // pred_check
      _
    $region23: #{tpu_custom_call.1} parent=1 // pred_check_branch
      %52 = sbr.rel (0) target = $region25
    $region24: #{tpu_custom_call.1} parent=1 // pred_region
      %53 = dma.done [#allocation6], 2048
    $region25: #{tpu_custom_call.1} parent=1 // pred_fallthru
      _
    %v54 = vld [vmem:[#allocation2] sm:$0xff]
    %v55 = vld [vmem:[#allocation5] sm:$0xff]
    %v56 = vld [vmem:[#allocation5 + $0x8] sm:$0xff]
    %v57 = vld [vmem:[#allocation5 + $0x10] sm:$0xff]
    %v58 = vld [vmem:[#allocation5 + $0x18] sm:$0xff]
    %v59 = vld [vmem:[#allocation5 + $0x20] sm:$0xff]
    %v60 = vld [vmem:[#allocation5 + $0x28] sm:$0xff]
    %v61 = vld [vmem:[#allocation5 + $0x30] sm:$0xff]
    %v62 = vld [vmem:[#allocation5 + $0x38] sm:$0xff]
    %v63 = vld [vmem:[#allocation5 + $0x40] sm:$0xff]
    %v64 = vld [vmem:[#allocation5 + $0x48] sm:$0xff]
    %v65 = vld [vmem:[#allocation5 + $0x50] sm:$0xff]
    %v66 = vld [vmem:[#allocation5 + $0x58] sm:$0xff]
    %v67 = vld [vmem:[#allocation5 + $0x60] sm:$0xff]
    %v68 = vld [vmem:[#allocation5 + $0x68] sm:$0xff]
    %v69 = vld [vmem:[#allocation5 + $0x70] sm:$0xff]
    %v70 = vld [vmem:[#allocation5 + $0x78] sm:$0xff]
    %v71 = vld [vmem:[#allocation5 + $0x80] sm:$0xff]
    %v72 = vld [vmem:[#allocation5 + $0x88] sm:$0xff]
    %v73 = vld [vmem:[#allocation5 + $0x90] sm:$0xff]
    %v74 = vld [vmem:[#allocation5 + $0x98] sm:$0xff]
    %v75 = vld [vmem:[#allocation5 + $0xa0] sm:$0xff]
    %v76 = vld [vmem:[#allocation5 + $0xa8] sm:$0xff]
    %v77 = vld [vmem:[#allocation5 + $0xb0] sm:$0xff]
    %v78 = vld [vmem:[#allocation5 + $0xb8] sm:$0xff]
    %v79 = vld [vmem:[#allocation5 + $0xc0] sm:$0xff]
    %v80 = vld [vmem:[#allocation5 + $0xc8] sm:$0xff]
    %v81 = vld [vmem:[#allocation5 + $0xd0] sm:$0xff]
    %v82 = vld [vmem:[#allocation5 + $0xd8] sm:$0xff]
    %v83 = vld [vmem:[#allocation5 + $0xe0] sm:$0xff]
    %v84 = vld [vmem:[#allocation5 + $0xe8] sm:$0xff]
    %v85 = vld [vmem:[#allocation5 + $0xf0] sm:$0xff]
    %v86 = vld [vmem:[#allocation5 + $0xf8] sm:$0xff]
    %87 = vmatprep.subr.mxu0 %v86
    %88 = vmatpush1.msra.mxu0 %v85
    %89 = vmatprep.subr.mxu0 %v84
    %90 = vmatpush1.msra.mxu0 %v83
    %91 = vmatprep.subr.mxu0 %v82
    %92 = vmatpush1.msra.mxu0 %v81
    %93 = vmatprep.subr.mxu0 %v80
    %94 = vmatpush1.msra.mxu0 %v79
    %95 = vmatprep.subr.mxu0 %v78
    %96 = vmatpush1.msra.mxu0 %v77
    %97 = vmatprep.subr.mxu0 %v76
    %98 = vmatpush1.msra.mxu0 %v75
    %99 = vmatprep.subr.mxu0 %v74
    %100 = vmatpush1.msra.mxu0 %v73
    %101 = vmatprep.subr.mxu0 %v72
    %102 = vmatpush1.msra.mxu0 %v71
    %103 = vmatprep.subr.mxu0 %v70
    %104 = vmatpush1.msra.mxu0 %v69
    %105 = vmatprep.subr.mxu0 %v68
    %106 = vmatpush1.msra.mxu0 %v67
    %107 = vmatprep.subr.mxu0 %v66
    %108 = vmatpush1.msra.mxu0 %v65
    %109 = vmatprep.subr.mxu0 %v64
    %110 = vmatpush1.msra.mxu0 %v63
    %111 = vmatprep.subr.mxu0 %v62
    %112 = vmatpush1.msra.mxu0 %v61
    %113 = vmatprep.subr.mxu0 %v60
    %114 = vmatpush1.msra.mxu0 %v59
    %115 = vmatprep.subr.mxu0 %v58
    %116 = vmatpush1.msra.mxu0 %v57
    %117 = vmatprep.subr.mxu0 %v56
    %118 = vmatpush1.msra.mxu0 %v55
    %119 = vmatprep.subr.mxu0 0.0
    %120 = vmatpush2.msra.mxu0 0.0
    %121 = vmatprep.subr.mxu0 0.0
    %122 = vmatpush2.msra.mxu0 0.0
    %123 = vmatprep.subr.mxu0 0.0
    %124 = vmatpush2.msra.mxu0 0.0
    %125 = vmatprep.subr.mxu0 0.0
    %126 = vmatpush2.msra.mxu0 0.0
    %127 = vmatprep.subr.mxu0 0.0
    %128 = vmatpush2.msra.mxu0 0.0
    %129 = vmatprep.subr.mxu0 0.0
    %130 = vmatpush2.msra.mxu0 0.0
    %131 = vmatprep.subr.mxu0 0.0
    %132 = vmatpush2.msra.mxu0 0.0
    %133 = vmatprep.subr.mxu0 0.0
    %134 = vmatpush2.msra.mxu0 0.0
    %135 = vmatprep.subr.mxu0 0.0
    %136 = vmatpush2.msra.mxu0 0.0
    %137 = vmatprep.subr.mxu0 0.0
    %138 = vmatpush2.msra.mxu0 0.0
    %139 = vmatprep.subr.mxu0 0.0
    %140 = vmatpush2.msra.mxu0 0.0
    %141 = vmatprep.subr.mxu0 0.0
    %142 = vmatpush2.msra.mxu0 0.0
    %143 = vmatprep.subr.mxu0 0.0
    %144 = vmatpush2.msra.mxu0 0.0
    %145 = vmatprep.subr.mxu0 0.0
    %146 = vmatpush2.msra.mxu0 0.0
    %147 = vmatprep.subr.mxu0 0.0
    %148 = vmatpush2.msra.mxu0 0.0
    %149 = vmatprep.subr.mxu0 0.0
    %150 = vmatpush2.msra.mxu0 0.0
    %151 = vmatprep.mubr.f32.mxu0 0.0
    %152 = vmatmul.mubr.f32.gmra.mxu0 %v54
    %v153 = vpop.f32.mrf.mxu0
    %v154 = vadd.f32 0.0, %v153
    %v155 = vpop.f32.mrf.mxu0
    %v156 = vadd.f32 0.0, %v155
    %157 = vdwg.mxu0
    %v158 = vxor.u32 %v154, 2147483648
    %v159 = vmul.f32 %v158, 1.442695
    %v160 = vpow.pop %v159
    %v161 = vadd.f32 %v160, 1.0
    %v162 = vrcp.pop %v161
    %v163 = vmul.f32 1.0, %v162
    %v164 = vxor.u32 %v156, 2147483648
    %v165 = vmul.f32 %v164, 1.442695
    %v166 = vpow.pop %v165
    %v167 = vadd.f32 %v166, 1.0
    %v168 = vrcp.pop %v167
    %v169 = vmul.f32 1.0, %v168
    %v170 = vmul.f32 %v163, %v54
    %v171 = vld [vmem:[#allocation7] sm:$0xff]
    %v172 = vld [vmem:[#allocation7 + $0x8] sm:$0xff]
    %v173 = vld [vmem:[#allocation7 + $0x10] sm:$0xff]
    %v174 = vld [vmem:[#allocation7 + $0x18] sm:$0xff]
    %v175 = vld [vmem:[#allocation7 + $0x20] sm:$0xff]
    %v176 = vld [vmem:[#allocation7 + $0x28] sm:$0xff]
    %v177 = vld [vmem:[#allocation7 + $0x30] sm:$0xff]
    %v178 = vld [vmem:[#allocation7 + $0x38] sm:$0xff]
    %v179 = vld [vmem:[#allocation7 + $0x40] sm:$0xff]
    %v180 = vld [vmem:[#allocation7 + $0x48] sm:$0xff]
    %v181 = vld [vmem:[#allocation7 + $0x50] sm:$0xff]
    %v182 = vld [vmem:[#allocation7 + $0x58] sm:$0xff]
    %v183 = vld [vmem:[#allocation7 + $0x60] sm:$0xff]
    %v184 = vld [vmem:[#allocation7 + $0x68] sm:$0xff]
    %v185 = vld [vmem:[#allocation7 + $0x70] sm:$0xff]
    %v186 = vld [vmem:[#allocation7 + $0x78] sm:$0xff]
    %187 = vmatprep.subr.mxu0 0.0
    %188 = vmatpush1.msra.mxu0 %v186
    %189 = vmatprep.subr.mxu0 0.0
    %190 = vmatpush1.msra.mxu0 %v185
    %191 = vmatprep.subr.mxu0 0.0
    %192 = vmatpush1.msra.mxu0 %v184
    %193 = vmatprep.subr.mxu0 0.0
    %194 = vmatpush1.msra.mxu0 %v183
    %195 = vmatprep.subr.mxu0 0.0
    %196 = vmatpush1.msra.mxu0 %v182
    %197 = vmatprep.subr.mxu0 0.0
    %198 = vmatpush1.msra.mxu0 %v181
    %199 = vmatprep.subr.mxu0 0.0
    %200 = vmatpush1.msra.mxu0 %v180
    %201 = vmatprep.subr.mxu0 0.0
    %202 = vmatpush1.msra.mxu0 %v179
    %203 = vmatprep.subr.mxu0 0.0
    %204 = vmatpush1.msra.mxu0 %v178
    %205 = vmatprep.subr.mxu0 0.0
    %206 = vmatpush1.msra.mxu0 %v177
    %207 = vmatprep.subr.mxu0 0.0
    %208 = vmatpush1.msra.mxu0 %v176
    %209 = vmatprep.subr.mxu0 0.0
    %210 = vmatpush1.msra.mxu0 %v175
    %211 = vmatprep.subr.mxu0 0.0
    %212 = vmatpush1.msra.mxu0 %v174
    %213 = vmatprep.subr.mxu0 0.0
    %214 = vmatpush1.msra.mxu0 %v173
    %215 = vmatprep.subr.mxu0 0.0
    %216 = vmatpush1.msra.mxu0 %v172
    %217 = vmatprep.subr.mxu0 0.0
    %218 = vmatpush1.msra.mxu0 %v171
    %219 = vmatprep.subr.mxu0 0.0
    %220 = vmatpush2.msra.mxu0 0.0
    %221 = vmatprep.subr.mxu0 0.0
    %222 = vmatpush2.msra.mxu0 0.0
    %223 = vmatprep.subr.mxu0 0.0
    %224 = vmatpush2.msra.mxu0 0.0
    %225 = vmatprep.subr.mxu0 0.0
    %226 = vmatpush2.msra.mxu0 0.0
    %227 = vmatprep.subr.mxu0 0.0
    %228 = vmatpush2.msra.mxu0 0.0
    %229 = vmatprep.subr.mxu0 0.0
    %230 = vmatpush2.msra.mxu0 0.0
    %231 = vmatprep.subr.mxu0 0.0
    %232 = vmatpush2.msra.mxu0 0.0
    %233 = vmatprep.subr.mxu0 0.0
    %234 = vmatpush2.msra.mxu0 0.0
    %235 = vmatprep.subr.mxu0 0.0
    %236 = vmatpush2.msra.mxu0 0.0
    %237 = vmatprep.subr.mxu0 0.0
    %238 = vmatpush2.msra.mxu0 0.0
    %239 = vmatprep.subr.mxu0 0.0
    %240 = vmatpush2.msra.mxu0 0.0
    %241 = vmatprep.subr.mxu0 0.0
    %242 = vmatpush2.msra.mxu0 0.0
    %243 = vmatprep.subr.mxu0 0.0
    %244 = vmatpush2.msra.mxu0 0.0
    %245 = vmatprep.subr.mxu0 0.0
    %246 = vmatpush2.msra.mxu0 0.0
    %247 = vmatprep.subr.mxu0 0.0
    %248 = vmatpush2.msra.mxu0 0.0
    %249 = vmatprep.subr.mxu0 0.0
    %250 = vmatpush2.msra.mxu0 0.0
    %251 = vmatprep.mubr.f32.mxu0 0.0
    %252 = vmatmul.mubr.f32.gmra.mxu0 %v170
    %v253 = vpop.f32.mrf.mxu0
    %v254 = vadd.f32 0.0, %v253
    %v255 = vpop.f32.mrf.mxu0
    %256 = vdwg.mxu0
    %v257 = vtanh.pop %v254
    %v258 = vsub.f32 1.0, %v169
    %v259 = vsub.f32 %v257, %v54
    %v260 = vmul.f32 %v258, %v259
    %261 = vst [vmem:[#allocation8] sm:$0xff] %v260
    // Predicated region
    $region26: #{tpu_custom_call.1} parent=1 // pred_check
      _
    $region27: #{tpu_custom_call.1} parent=1 // pred_check_branch
      %263 = sbr.rel (0) target = $region29
    $region28: #{tpu_custom_call.1} parent=1 // pred_region
      %s265 = ssub.s32 128, 128
      %266 = vsyncadd [#allocation4], %s265
      %s268 = sshll.u32 [#allocation8], 4
      %s269 = int_to_ptr.vmem [resolvable:$true] %s268
      %271 = dma.vmem_to_hbm [thread:$0]  %s269, 128, %s3, [#allocation4]
    $region29: #{tpu_custom_call.1} parent=1 // pred_fallthru
      _
    // Predicated region
    $region30: #{tpu_custom_call.1} parent=1 // pred_check
      _
    $region31: #{tpu_custom_call.1} parent=1 // pred_check_branch
      %273 = sbr.rel (0) target = $region33
    $region32: #{tpu_custom_call.1} parent=1 // pred_region
      %274 = dma.done [#allocation4], 128
    $region33: #{tpu_custom_call.1} parent=1 // pred_fallthru
      _
    %275 = vsyncpa [#allocation3], 1
    %276 = vsyncpa [#allocation6], 1
    %277 = vsyncpa [#allocation4], 1

</llo_original>
